<compile_context>
chip_gen: v7x
topology: tpu7x:2x2x1
jax: 0.10.0
libtpu: 0.0.40
codegen_flags: <defaults>
</compile_context>

<pallas_src>
import functools

import jax
import jax.numpy as jnp
from jax.experimental import pallas as pl
from jax.experimental.pallas import tpu as pltpu

_SUBLANE = 8
_MAX_TILE_ROWS = 4096  # per-step VMEM stays tiny; grid stays short


def _round_up(x: int, m: int) -> int:
    return ((x + m - 1) // m) * m


def _pick_batch_tile(B: int, max_tile_rows: int) -> int:
    """Batch-tile size: as few grid steps as possible, but >=2 steps when the
    batch is big enough to split (so the 'parallel' axis can use both v7x TCs).
    Tiles are a multiple of 8 sublanes, or the full (small) batch."""
    if B <= 2 * _SUBLANE:
        return B                                   # single tiny tile (block == full dim)
    tb = _round_up(pl.cdiv(B, 2), _SUBLANE)        # aim for exactly 2 steps ...
    tb = min(tb, max_tile_rows)                    # ... unless that blows the tile cap
    return min(tb, B)


def _dqn_kernel(x_ref, w1_ref, b1_ref, w2_ref, b2_ref, w3_ref, b3_ref, o_ref):
    """One batch tile of the 3-layer MLP.  Matmuls accumulate in fp32 on the MXU;
    bias add + ReLU run in fp32 on the VPU.  Rows are independent, so any garbage
    in a ragged last tile stays in rows that are never written back."""
    x = x_ref[...]
    h1 = jnp.maximum(
        jnp.dot(x, w1_ref[...], preferred_element_type=jnp.float32) + b1_ref[...], 0.0)
    h2 = jnp.maximum(
        jnp.dot(h1, w2_ref[...], preferred_element_type=jnp.float32) + b2_ref[...], 0.0)
    o_ref[...] = (jnp.dot(h2, w3_ref[...], preferred_element_type=jnp.float32)
                  + b3_ref[...]).astype(o_ref.dtype)


@functools.partial(jax.jit, static_argnames=("max_tile_rows",))
def dqn_forward(state, w1, b1, w2, b2, w3, b3, *, max_tile_rows=_MAX_TILE_ROWS):
    """Fused DQN forward pass (act_val = fc3(relu(fc2(relu(fc1(state)))))).

    state: (B, input_dims) fp32
    w*:    (in_features, out_features) fp32   (x @ W + b  ==  PyTorch x @ W.T + b)
    b*:    (1, out_features) fp32
    Returns (B, num_actions) fp32 -- no padding, no post-kernel slice.
    """
    B, in_dim = state.shape
    l1_dim = w1.shape[1]
    l2_dim = w2.shape[1]
    num_actions = w3.shape[1]

    TB = _pick_batch_tile(B, max_tile_rows)
    grid = (pl.cdiv(B, TB),)   # ragged last block handled by Pallas (masked writeback)

    # Advisory cost hint for XLA scheduling around the custom call.
    flops = 2 * B * (in_dim * l1_dim + l1_dim * l2_dim + l2_dim * num_actions)
    bytes_accessed = 4 * (
        B * in_dim                                   # state read
        + in_dim * l1_dim + l1_dim * l2_dim + l2_dim * num_actions   # weights
        + l1_dim + l2_dim + num_actions              # biases
        + B * num_actions)                           # output write
    cost = pl.CostEstimate(flops=flops, transcendentals=0,
                           bytes_accessed=bytes_accessed)

    # Weights/biases: constant index_map -> stay VMEM-resident across the grid.
    const_spec = lambda shape: pl.BlockSpec(shape, lambda i: (0, 0))

    return pl.pallas_call(
        _dqn_kernel,
        out_shape=jax.ShapeDtypeStruct((B, num_actions), jnp.float32),
        grid_spec=pltpu.PrefetchScalarGridSpec(
            num_scalar_prefetch=0,
            grid=grid,
            in_specs=[
                pl.BlockSpec((TB, in_dim), lambda i: (i, 0)),   # state: batch-tiled
                const_spec(w1.shape), const_spec(b1.shape),
                const_spec(w2.shape), const_spec(b2.shape),
                const_spec(w3.shape), const_spec(b3.shape),
            ],
            out_specs=pl.BlockSpec((TB, num_actions), lambda i: (i, 0)),
        ),
        compiler_params=pltpu.CompilerParams(
            dimension_semantics=("parallel",)),   # shard batch tiles across TCs (v7x)
        cost_estimate=cost,
    )(state, w1, b1, w2, b2, w3, b3)


def init_linear(key, fan_in, fan_out):
    """PyTorch-style nn.Linear init: U(-1/sqrt(fan_in), 1/sqrt(fan_in)).
    Weight returned transposed to (fan_in, fan_out) for the x @ W layout."""
    kw, kb = jax.random.split(key)
    bound = 1.0 / jnp.sqrt(jnp.float32(fan_in))
    w = jax.random.uniform(kw, (fan_in, fan_out), jnp.float32, -bound, bound)
    b = jax.random.uniform(kb, (1, fan_out), jnp.float32, -bound, bound)
    return w, b


def _reference(state, w1, b1, w2, b2, w3, b3):
    h = jnp.maximum(state @ w1 + b1, 0.0)
    h = jnp.maximum(h @ w2 + b2, 0.0)
    return h @ w3 + b3


if __name__ == "__main__":
    # Shapes consistent with the module: input_dims=[16], l1_dim=32, l2_dim=32, num_actions=4
    input_dims = 16
    l1_dim = 32
    l2_dim = 32
    num_actions = 4

    key = jax.random.PRNGKey(0)
    k1, k2, k3, kx = jax.random.split(key, 4)

    w1, b1 = init_linear(k1, input_dims, l1_dim)
    w2, b2 = init_linear(k2, l1_dim, l2_dim)
    w3, b3 = init_linear(k3, l2_dim, num_actions)

    # A few batch sizes: single-row act() path, tiny, odd/ragged, and large (grid=2,
    # ragged last tile).  All fp32; every case exercises the no-pad/no-slice output.
    for i, batch in enumerate((1, 8, 37, 1000)):
        state = jax.random.normal(jax.random.fold_in(kx, i),
                                  (batch, input_dims), jnp.float32)
        act_val = jax.block_until_ready(dqn_forward(state, w1, b1, w2, b2, w3, b3))
        ref = _reference(state, w1, b1, w2, b2, w3, b3)
        assert act_val.shape == (batch, num_actions), act_val.shape
        assert jnp.allclose(act_val, ref, atol=1e-5, rtol=1e-5), f"mismatch at B={batch}"

    print("KERNEL_OK")
</pallas_src>

<mosaic_0001>
module attributes {stable_mosaic.version = 11 : i64} {
  func.func @_dqn_kernel(%arg0: i32, %arg1: memref<1x16xf32, #tpu.memory_space<vmem>>, %arg2: memref<16x32xf32, #tpu.memory_space<vmem>>, %arg3: memref<1x32xf32, #tpu.memory_space<vmem>>, %arg4: memref<32x32xf32, #tpu.memory_space<vmem>>, %arg5: memref<1x32xf32, #tpu.memory_space<vmem>>, %arg6: memref<32x4xf32, #tpu.memory_space<vmem>>, %arg7: memref<1x4xf32, #tpu.memory_space<vmem>>, %arg8: memref<1x4xf32, #tpu.memory_space<vmem>>) attributes {dimension_semantics = [#tpu.dimension_semantics<parallel>], iteration_bounds = array<i64: 1>, scalar_prefetch = 0 : i64, scratch_operands = 0 : i64, tpu.core_type = #tpu.core_type<tc>, window_params = [{transform_indices = @transform_0, window_bounds = array<i64: 1, 16>}, {pipeline_mode = #tpu.pipeline_mode<synchronous>, transform_indices = @transform_1, window_bounds = array<i64: 16, 32>}, {pipeline_mode = #tpu.pipeline_mode<synchronous>, transform_indices = @transform_2, window_bounds = array<i64: 1, 32>}, {pipeline_mode = #tpu.pipeline_mode<synchronous>, transform_indices = @transform_3, window_bounds = array<i64: 32, 32>}, {pipeline_mode = #tpu.pipeline_mode<synchronous>, transform_indices = @transform_4, window_bounds = array<i64: 1, 32>}, {pipeline_mode = #tpu.pipeline_mode<synchronous>, transform_indices = @transform_5, window_bounds = array<i64: 32, 4>}, {pipeline_mode = #tpu.pipeline_mode<synchronous>, transform_indices = @transform_6, window_bounds = array<i64: 1, 4>}, {transform_indices = @transform_7, window_bounds = array<i64: 1, 4>}]} {
    %c0 = arith.constant 0 : index
    %c0_0 = arith.constant 0 : index
    %0 = vector.load %arg1[%c0, %c0_0] : memref<1x16xf32, #tpu.memory_space<vmem>>, vector<1x16xf32>
    %c0_1 = arith.constant 0 : index
    %c0_2 = arith.constant 0 : index
    %1 = vector.load %arg2[%c0_1, %c0_2] : memref<16x32xf32, #tpu.memory_space<vmem>>, vector<16x32xf32>
    %cst = arith.constant dense<0.000000e+00> : vector<1x32xf32>
    %2 = tpu.matmul %0, %1, %cst {dimension_numbers = #tpu.dot_dimension_numbers<[1], [0], [0], [1], [0, 0, 1, 1], [], []>} : vector<1x16xf32>, vector<16x32xf32>, vector<1x32xf32> -> vector<1x32xf32>
    %c0_3 = arith.constant 0 : index
    %c0_4 = arith.constant 0 : index
    %3 = vector.load %arg3[%c0_3, %c0_4] : memref<1x32xf32, #tpu.memory_space<vmem>>, vector<1x32xf32>
    %4 = arith.addf %2, %3 : vector<1x32xf32>
    %cst_5 = arith.constant 0.000000e+00 : f32
    %5 = vector.broadcast %cst_5 : f32 to vector<1x32xf32>
    %6 = arith.maximumf %4, %5 : vector<1x32xf32>
    %c0_6 = arith.constant 0 : index
    %c0_7 = arith.constant 0 : index
    %7 = vector.load %arg4[%c0_6, %c0_7] : memref<32x32xf32, #tpu.memory_space<vmem>>, vector<32x32xf32>
    %cst_8 = arith.constant dense<0.000000e+00> : vector<1x32xf32>
    %8 = tpu.matmul %6, %7, %cst_8 {dimension_numbers = #tpu.dot_dimension_numbers<[1], [0], [0], [1], [0, 0, 1, 1], [], []>} : vector<1x32xf32>, vector<32x32xf32>, vector<1x32xf32> -> vector<1x32xf32>
    %c0_9 = arith.constant 0 : index
    %c0_10 = arith.constant 0 : index
    %9 = vector.load %arg5[%c0_9, %c0_10] : memref<1x32xf32, #tpu.memory_space<vmem>>, vector<1x32xf32>
    %10 = arith.addf %8, %9 : vector<1x32xf32>
    %cst_11 = arith.constant 0.000000e+00 : f32
    %11 = vector.broadcast %cst_11 : f32 to vector<1x32xf32>
    %12 = arith.maximumf %10, %11 : vector<1x32xf32>
    %c0_12 = arith.constant 0 : index
    %c0_13 = arith.constant 0 : index
    %13 = vector.load %arg6[%c0_12, %c0_13] : memref<32x4xf32, #tpu.memory_space<vmem>>, vector<32x4xf32>
    %cst_14 = arith.constant dense<0.000000e+00> : vector<1x4xf32>
    %14 = tpu.matmul %12, %13, %cst_14 {dimension_numbers = #tpu.dot_dimension_numbers<[1], [0], [0], [1], [0, 0, 1, 1], [], []>} : vector<1x32xf32>, vector<32x4xf32>, vector<1x4xf32> -> vector<1x4xf32>
    %c0_15 = arith.constant 0 : index
    %c0_16 = arith.constant 0 : index
    %15 = vector.load %arg7[%c0_15, %c0_16] : memref<1x4xf32, #tpu.memory_space<vmem>>, vector<1x4xf32>
    %16 = arith.addf %14, %15 : vector<1x4xf32>
    %c0_17 = arith.constant 0 : index
    %c0_18 = arith.constant 0 : index
    %17 = vector.load %arg8[%c0_17, %c0_18] : memref<1x4xf32, #tpu.memory_space<vmem>>, vector<1x4xf32>
    tpu.vector_store %arg8[%c0_17, %c0_18], %16 {strides = array<i32>} : memref<1x4xf32, #tpu.memory_space<vmem>>, vector<1x4xf32>,
    return
  }
  func.func @transform_0(%arg0: i32) -> (i32, i32) {
    %c0_i32 = arith.constant 0 : i32
    %c0_i32_0 = arith.constant 0 : i32
    return %arg0, %c0_i32 : i32, i32
  }
  func.func @transform_1(%arg0: i32) -> (i32, i32) {
    %c0_i32 = arith.constant 0 : i32
    %c0_i32_0 = arith.constant 0 : i32
    %c0_i32_1 = arith.constant 0 : i32
    return %c0_i32, %c0_i32_0 : i32, i32
  }
  func.func @transform_2(%arg0: i32) -> (i32, i32) {
    %c0_i32 = arith.constant 0 : i32
    %c0_i32_0 = arith.constant 0 : i32
    %c0_i32_1 = arith.constant 0 : i32
    return %c0_i32, %c0_i32_0 : i32, i32
  }
  func.func @transform_3(%arg0: i32) -> (i32, i32) {
    %c0_i32 = arith.constant 0 : i32
    %c0_i32_0 = arith.constant 0 : i32
    %c0_i32_1 = arith.constant 0 : i32
    return %c0_i32, %c0_i32_0 : i32, i32
  }
  func.func @transform_4(%arg0: i32) -> (i32, i32) {
    %c0_i32 = arith.constant 0 : i32
    %c0_i32_0 = arith.constant 0 : i32
    %c0_i32_1 = arith.constant 0 : i32
    return %c0_i32, %c0_i32_0 : i32, i32
  }
  func.func @transform_5(%arg0: i32) -> (i32, i32) {
    %c0_i32 = arith.constant 0 : i32
    %c0_i32_0 = arith.constant 0 : i32
    %c0_i32_1 = arith.constant 0 : i32
    return %c0_i32, %c0_i32_0 : i32, i32
  }
  func.func @transform_6(%arg0: i32) -> (i32, i32) {
    %c0_i32 = arith.constant 0 : i32
    %c0_i32_0 = arith.constant 0 : i32
    %c0_i32_1 = arith.constant 0 : i32
    return %c0_i32, %c0_i32_0 : i32, i32
  }
  func.func @transform_7(%arg0: i32) -> (i32, i32) {
    %c0_i32 = arith.constant 0 : i32
    %c0_i32_0 = arith.constant 0 : i32
    return %arg0, %c0_i32 : i32, i32
  }
}

</mosaic_0001>

<llo_original>
// kernel: dqn_forward.1
$region0: #{dqn_forward.1}
  #allocation0 [shape = 'u32[]', space=smem, size = 0x4, offset = 0x4, fixed_abs, tag = 'smem constant byte address 0x4 - core index']
  #allocation1 [shape = 'u32[144,128]{1,0:T(1,128)}', space=vmem, size = 0x12000, scoped, tag = 'internal scratch']
  %s0 = inlined_call_operand.vmem [shape: f32[1,16], index: 0, kind: input, shape index: {}]
  %s1 = inlined_call_operand.hbm [shape: f32[16,32], index: 1, kind: input, shape index: {}]
  %s2 = inlined_call_operand.vmem [shape: f32[1,32], index: 2, kind: input, shape index: {}]
  %s3 = inlined_call_operand.vmem [shape: f32[32,32], index: 3, kind: input, shape index: {}]
  %s4 = inlined_call_operand.vmem [shape: f32[1,32], index: 4, kind: input, shape index: {}]
  %s5 = inlined_call_operand.vmem [shape: f32[32,4], index: 5, kind: input, shape index: {}]
  %s6 = inlined_call_operand.vmem [shape: f32[1,4], index: 6, kind: input, shape index: {}]
  %s7 = inlined_call_operand.hbm [shape: f32[1,4], index: 7, kind: output, shape index: {}]
  %s8 = sld [smem:[#allocation0]]
  $region42: #{dqn_forward.1} parent=0
    _
  %s10 = ssub.s32 1, %s8
  %s11 = scalar_select 0, %s10, %s8
  $region1: #{dqn_forward.1} parent=0
    #allocation2 [shape = 'u8[8192]{0}', space=vmem, size = 0x2000, scoped, tag = 'input window, operand 1, single buffered']
    #allocation3 [shape = 's32[1]{0}', space=sflag, size = 0x4, scoped, tag = 'scoped memory for dqn_forward.1']
    #allocation4 [shape = 's32[1]{0}', space=sflag, size = 0x4, scoped, tag = 'scoped memory for dqn_forward.1']
    #allocation5 [shape = 'u8[512]{0}', space=vmem, size = 0x400, scoped, tag = 'output window, operand 0, single buffered']
    %12 = vsyncpa [#allocation3], 0
    %13 = vsyncpa [#allocation4], 0
    // Predicated region
    $region2: #{dqn_forward.1} parent=1 // pred_check
      _
    $region3: #{dqn_forward.1} parent=1 // pred_check_branch
      %15 = sbr.rel (0) target = $region5
    $region4: #{dqn_forward.1} parent=1 // pred_region
      _
    $region5: #{dqn_forward.1} parent=1 // pred_fallthru
      _
    // Predicated region
    $region6: #{dqn_forward.1} parent=1 // pred_check
      _
    $region7: #{dqn_forward.1} parent=1 // pred_check_branch
      %17 = sbr.rel (0) target = $region9
    $region8: #{dqn_forward.1} parent=1 // pred_region
      %s19 = ssub.s32 256, 256
      %20 = vsyncadd [#allocation3], %s19
      %s21 = sshll.u32 [#allocation2], 4
      %s22 = int_to_ptr.vmem [resolvable:$true] %s21
      %27 = dma.hbm_to_vmem [thread:$0]  %s1, 256, %s22, [#allocation3], 128, 128, 8
    $region9: #{dqn_forward.1} parent=1 // pred_fallthru
      _
    // Predicated region
    $region10: #{dqn_forward.1} parent=1 // pred_check
      _
    $region11: #{dqn_forward.1} parent=1 // pred_check_branch
      %29 = sbr.rel (0) target = $region13
    $region12: #{dqn_forward.1} parent=1 // pred_region
      _
    $region13: #{dqn_forward.1} parent=1 // pred_fallthru
      _
    // Predicated region
    $region14: #{dqn_forward.1} parent=1 // pred_check
      _
    $region15: #{dqn_forward.1} parent=1 // pred_check_branch
      %31 = sbr.rel (0) target = $region17
    $region16: #{dqn_forward.1} parent=1 // pred_region
      _
    $region17: #{dqn_forward.1} parent=1 // pred_fallthru
      _
    // Predicated region
    $region18: #{dqn_forward.1} parent=1 // pred_check
      _
    $region19: #{dqn_forward.1} parent=1 // pred_check_branch
      %33 = sbr.rel (0) target = $region21
    $region20: #{dqn_forward.1} parent=1 // pred_region
      _
    $region21: #{dqn_forward.1} parent=1 // pred_fallthru
      _
    // Predicated region
    $region22: #{dqn_forward.1} parent=1 // pred_check
      _
    $region23: #{dqn_forward.1} parent=1 // pred_check_branch
      %35 = sbr.rel (0) target = $region25
    $region24: #{dqn_forward.1} parent=1 // pred_region
      _
    $region25: #{dqn_forward.1} parent=1 // pred_fallthru
      _
    // Predicated region
    $region26: #{dqn_forward.1} parent=1 // pred_check
      _
    $region27: #{dqn_forward.1} parent=1 // pred_check_branch
      %37 = sbr.rel (0) target = $region29
    $region28: #{dqn_forward.1} parent=1 // pred_region
      _
    $region29: #{dqn_forward.1} parent=1 // pred_fallthru
      _
    // Predicated region
    $region30: #{dqn_forward.1} parent=1 // pred_check
      _
    $region31: #{dqn_forward.1} parent=1 // pred_check_branch
      %39 = sbr.rel (0) target = $region33
    $region32: #{dqn_forward.1} parent=1 // pred_region
      %40 = dma.done [#allocation3], 256
    $region33: #{dqn_forward.1} parent=1 // pred_fallthru
      _
    %v41 = vld [vmem:[%s0] sm:$0x1]
    %v42 = vld [vmem:[#allocation2] sm:$0xff]
    %v43 = vld [vmem:[#allocation2 + $0x8] sm:$0xff]
    %v44 = vld [vmem:[%s2] sm:$0x1]
    %vm45 = vcmask 130048
    %v47 = vsel %vm45, %v41, 0
    %49 = vmatprep.subr.mxu0 0.0
    %50 = vmatpush1.msra.mxu0 %v42
    %51 = vmatprep.subr.mxu0 0.0
    %52 = vmatpush1.msra.mxu0 %v43
    %53 = vmatprep.subr.mxu0 0.0
    %54 = vmatpush1.msra.mxu0 0.0
    %55 = vmatprep.subr.mxu0 0.0
    %56 = vmatpush1.msra.mxu0 0.0
    %57 = vmatprep.subr.mxu0 0.0
    %58 = vmatpush1.msra.mxu0 0.0
    %59 = vmatprep.subr.mxu0 0.0
    %60 = vmatpush1.msra.mxu0 0.0
    %61 = vmatprep.subr.mxu0 0.0
    %62 = vmatpush1.msra.mxu0 0.0
    %63 = vmatprep.subr.mxu0 0.0
    %64 = vmatpush1.msra.mxu0 0.0
    %65 = vmatprep.subr.mxu0 0.0
    %66 = vmatpush1.msra.mxu0 0.0
    %67 = vmatprep.subr.mxu0 0.0
    %68 = vmatpush1.msra.mxu0 0.0
    %69 = vmatprep.subr.mxu0 0.0
    %70 = vmatpush1.msra.mxu0 0.0
    %71 = vmatprep.subr.mxu0 0.0
    %72 = vmatpush1.msra.mxu0 0.0
    %73 = vmatprep.subr.mxu0 0.0
    %74 = vmatpush1.msra.mxu0 0.0
    %75 = vmatprep.subr.mxu0 0.0
    %76 = vmatpush1.msra.mxu0 0.0
    %77 = vmatprep.subr.mxu0 0.0
    %78 = vmatpush1.msra.mxu0 0.0
    %79 = vmatprep.subr.mxu0 0.0
    %80 = vmatpush1.msra.mxu0 0.0
    %81 = vmatprep.subr.mxu0 0.0
    %82 = vmatpush1.msra.mxu0 0.0
    %83 = vmatprep.subr.mxu0 0.0
    %84 = vmatpush1.msra.mxu0 0.0
    %85 = vmatprep.subr.mxu0 0.0
    %86 = vmatpush1.msra.mxu0 0.0
    %87 = vmatprep.subr.mxu0 0.0
    %88 = vmatpush1.msra.mxu0 0.0
    %89 = vmatprep.subr.mxu0 0.0
    %90 = vmatpush1.msra.mxu0 0.0
    %91 = vmatprep.subr.mxu0 0.0
    %92 = vmatpush1.msra.mxu0 0.0
    %93 = vmatprep.subr.mxu0 0.0
    %94 = vmatpush1.msra.mxu0 0.0
    %95 = vmatprep.subr.mxu0 0.0
    %96 = vmatpush1.msra.mxu0 0.0
    %97 = vmatprep.subr.mxu0 0.0
    %98 = vmatpush1.msra.mxu0 0.0
    %99 = vmatprep.subr.mxu0 0.0
    %100 = vmatpush1.msra.mxu0 0.0
    %101 = vmatprep.subr.mxu0 0.0
    %102 = vmatpush1.msra.mxu0 0.0
    %103 = vmatprep.subr.mxu0 0.0
    %104 = vmatpush1.msra.mxu0 0.0
    %105 = vmatprep.subr.mxu0 0.0
    %106 = vmatpush1.msra.mxu0 0.0
    %107 = vmatprep.subr.mxu0 0.0
    %108 = vmatpush1.msra.mxu0 0.0
    %109 = vmatprep.subr.mxu0 0.0
    %110 = vmatpush1.msra.mxu0 0.0
    %111 = vmatprep.subr.mxu0 0.0
    %112 = vmatpush1.msra.mxu0 0.0
    %113 = vmatprep.mubr.f32.mxu0 0.0
    %114 = vmatmul.mubr.f32.gmra.mrb[0].mxu0 %v47
    %v115 = vpop.f32.mrb[0].mxu0
    %v116 = vadd.f32 %v44, %v115
    %v117 = vpop.f32.mrb[0].mxu0
    %118 = vdwg.mxu0
    %v119 = vmax.f32 %v116, 0.0
    %v120 = vld [vmem:[%s3] sm:$0xff]
    %v121 = vld [vmem:[%s3 + $0x8] sm:$0xff]
    %v122 = vld [vmem:[%s3 + $0x10] sm:$0xff]
    %v123 = vld [vmem:[%s3 + $0x18] sm:$0xff]
    %v124 = vld [vmem:[%s4] sm:$0x1]
    %vm125 = vcmask 261120
    %v127 = vsel %vm125, %v119, 0
    %129 = vmatprep.subr.mxu0 0.0
    %130 = vmatpush1.msra.mxu0 %v120
    %131 = vmatprep.subr.mxu0 0.0
    %132 = vmatpush1.msra.mxu0 %v121
    %133 = vmatprep.subr.mxu0 0.0
    %134 = vmatpush1.msra.mxu0 %v122
    %135 = vmatprep.subr.mxu0 0.0
    %136 = vmatpush1.msra.mxu0 %v123
    %137 = vmatprep.subr.mxu0 0.0
    %138 = vmatpush1.msra.mxu0 0.0
    %139 = vmatprep.subr.mxu0 0.0
    %140 = vmatpush1.msra.mxu0 0.0
    %141 = vmatprep.subr.mxu0 0.0
    %142 = vmatpush1.msra.mxu0 0.0
    %143 = vmatprep.subr.mxu0 0.0
    %144 = vmatpush1.msra.mxu0 0.0
    %145 = vmatprep.subr.mxu0 0.0
    %146 = vmatpush1.msra.mxu0 0.0
    %147 = vmatprep.subr.mxu0 0.0
    %148 = vmatpush1.msra.mxu0 0.0
    %149 = vmatprep.subr.mxu0 0.0
    %150 = vmatpush1.msra.mxu0 0.0
    %151 = vmatprep.subr.mxu0 0.0
    %152 = vmatpush1.msra.mxu0 0.0
    %153 = vmatprep.subr.mxu0 0.0
    %154 = vmatpush1.msra.mxu0 0.0
    %155 = vmatprep.subr.mxu0 0.0
    %156 = vmatpush1.msra.mxu0 0.0
    %157 = vmatprep.subr.mxu0 0.0
    %158 = vmatpush1.msra.mxu0 0.0
    %159 = vmatprep.subr.mxu0 0.0
    %160 = vmatpush1.msra.mxu0 0.0
    %161 = vmatprep.subr.mxu0 0.0
    %162 = vmatpush1.msra.mxu0 0.0
    %163 = vmatprep.subr.mxu0 0.0
    %164 = vmatpush1.msra.mxu0 0.0
    %165 = vmatprep.subr.mxu0 0.0
    %166 = vmatpush1.msra.mxu0 0.0
    %167 = vmatprep.subr.mxu0 0.0
    %168 = vmatpush1.msra.mxu0 0.0
    %169 = vmatprep.subr.mxu0 0.0
    %170 = vmatpush1.msra.mxu0 0.0
    %171 = vmatprep.subr.mxu0 0.0
    %172 = vmatpush1.msra.mxu0 0.0
    %173 = vmatprep.subr.mxu0 0.0
    %174 = vmatpush1.msra.mxu0 0.0
    %175 = vmatprep.subr.mxu0 0.0
    %176 = vmatpush1.msra.mxu0 0.0
    %177 = vmatprep.subr.mxu0 0.0
    %178 = vmatpush1.msra.mxu0 0.0
    %179 = vmatprep.subr.mxu0 0.0
    %180 = vmatpush1.msra.mxu0 0.0
    %181 = vmatprep.subr.mxu0 0.0
    %182 = vmatpush1.msra.mxu0 0.0
    %183 = vmatprep.subr.mxu0 0.0
    %184 = vmatpush1.msra.mxu0 0.0
    %185 = vmatprep.subr.mxu0 0.0
    %186 = vmatpush1.msra.mxu0 0.0
    %187 = vmatprep.subr.mxu0 0.0
    %188 = vmatpush1.msra.mxu0 0.0
    %189 = vmatprep.subr.mxu0 0.0
    %190 = vmatpush1.msra.mxu0 0.0
    %191 = vmatprep.subr.mxu0 0.0
    %192 = vmatpush1.msra.mxu0 0.0
    %193 = vmatprep.mubr.f32.mxu0 0.0
    %194 = vmatmul.mubr.f32.gmra.mrb[0].mxu0 %v127
    %v195 = vpop.f32.mrb[0].mxu0
    %v196 = vadd.f32 %v124, %v195
    %v197 = vpop.f32.mrb[0].mxu0
    %198 = vdwg.mxu0
    %v199 = vmax.f32 %v196, 0.0
    %v200 = vld [vmem:[%s5] sm:$0xff]
    %v201 = vld [vmem:[%s5 + $0x8] sm:$0xff]
    %v202 = vld [vmem:[%s5 + $0x10] sm:$0xff]
    %v203 = vld [vmem:[%s5 + $0x18] sm:$0xff]
    %v204 = vld [vmem:[%s6] sm:$0x1]
    %v206 = vsel %vm125, %v199, 0
    %208 = vmatprep.subr.mxu0 0.0
    %209 = vmatpush1.msra.mxu0 %v200
    %210 = vmatprep.subr.mxu0 0.0
    %211 = vmatpush1.msra.mxu0 %v201
    %212 = vmatprep.subr.mxu0 0.0
    %213 = vmatpush1.msra.mxu0 %v202
    %214 = vmatprep.subr.mxu0 0.0
    %215 = vmatpush1.msra.mxu0 %v203
    %216 = vmatprep.subr.mxu0 0.0
    %217 = vmatpush1.msra.mxu0 0.0
    %218 = vmatprep.subr.mxu0 0.0
    %219 = vmatpush1.msra.mxu0 0.0
    %220 = vmatprep.subr.mxu0 0.0
    %221 = vmatpush1.msra.mxu0 0.0
    %222 = vmatprep.subr.mxu0 0.0
    %223 = vmatpush1.msra.mxu0 0.0
    %224 = vmatprep.subr.mxu0 0.0
    %225 = vmatpush1.msra.mxu0 0.0
    %226 = vmatprep.subr.mxu0 0.0
    %227 = vmatpush1.msra.mxu0 0.0
    %228 = vmatprep.subr.mxu0 0.0
    %229 = vmatpush1.msra.mxu0 0.0
    %230 = vmatprep.subr.mxu0 0.0
    %231 = vmatpush1.msra.mxu0 0.0
    %232 = vmatprep.subr.mxu0 0.0
    %233 = vmatpush1.msra.mxu0 0.0
    %234 = vmatprep.subr.mxu0 0.0
    %235 = vmatpush1.msra.mxu0 0.0
    %236 = vmatprep.subr.mxu0 0.0
    %237 = vmatpush1.msra.mxu0 0.0
    %238 = vmatprep.subr.mxu0 0.0
    %239 = vmatpush1.msra.mxu0 0.0
    %240 = vmatprep.subr.mxu0 0.0
    %241 = vmatpush1.msra.mxu0 0.0
    %242 = vmatprep.subr.mxu0 0.0
    %243 = vmatpush1.msra.mxu0 0.0
    %244 = vmatprep.subr.mxu0 0.0
    %245 = vmatpush1.msra.mxu0 0.0
    %246 = vmatprep.subr.mxu0 0.0
    %247 = vmatpush1.msra.mxu0 0.0
    %248 = vmatprep.subr.mxu0 0.0
    %249 = vmatpush1.msra.mxu0 0.0
    %250 = vmatprep.subr.mxu0 0.0
    %251 = vmatpush1.msra.mxu0 0.0
    %252 = vmatprep.subr.mxu0 0.0
    %253 = vmatpush1.msra.mxu0 0.0
    %254 = vmatprep.subr.mxu0 0.0
    %255 = vmatpush1.msra.mxu0 0.0
    %256 = vmatprep.subr.mxu0 0.0
    %257 = vmatpush1.msra.mxu0 0.0
    %258 = vmatprep.subr.mxu0 0.0
    %259 = vmatpush1.msra.mxu0 0.0
    %260 = vmatprep.subr.mxu0 0.0
    %261 = vmatpush1.msra.mxu0 0.0
    %262 = vmatprep.subr.mxu0 0.0
    %263 = vmatpush1.msra.mxu0 0.0
    %264 = vmatprep.subr.mxu0 0.0
    %265 = vmatpush1.msra.mxu0 0.0
    %266 = vmatprep.subr.mxu0 0.0
    %267 = vmatpush1.msra.mxu0 0.0
    %268 = vmatprep.subr.mxu0 0.0
    %269 = vmatpush1.msra.mxu0 0.0
    %270 = vmatprep.subr.mxu0 0.0
    %271 = vmatpush1.msra.mxu0 0.0
    %272 = vmatprep.mubr.f32.mxu0 0.0
    %273 = vmatmul.mubr.f32.gmra.mrb[0].mxu0 %v206
    %v274 = vpop.f32.mrb[0].mxu0
    %v275 = vadd.f32 %v204, %v274
    %v276 = vpop.f32.mrb[0].mxu0
    %277 = vdwg.mxu0
    %vm278 = vcmask 24576
    %279 = vst.msk [vmem:[#allocation5] sm:$0x1] %vm278, %v275
    // Predicated region
    $region34: #{dqn_forward.1} parent=1 // pred_check
      _
    $region35: #{dqn_forward.1} parent=1 // pred_check_branch
      %281 = sbr.rel (0) target = $region37
    $region36: #{dqn_forward.1} parent=1 // pred_region
      %s283 = ssub.s32 16, 16
      %284 = vsyncadd [#allocation4], %s283
      %s286 = sshll.u32 [#allocation5], 4
      %s287 = int_to_ptr.vmem [resolvable:$true] %s286
      %289 = dma.vmem_to_hbm [thread:$0]  %s287, 16, %s7, [#allocation4]
    $region37: #{dqn_forward.1} parent=1 // pred_fallthru
      _
    // Predicated region
    $region38: #{dqn_forward.1} parent=1 // pred_check
      _
    $region39: #{dqn_forward.1} parent=1 // pred_check_branch
      %291 = sbr.rel (0) target = $region41
    $region40: #{dqn_forward.1} parent=1 // pred_region
      %292 = dma.done [#allocation4], 16
    $region41: #{dqn_forward.1} parent=1 // pred_fallthru
      _
    %293 = vsyncpa [#allocation3], 1
    %294 = vsyncpa [#allocation4], 1

</llo_original>
